<compile_context>
chip_gen: v7x
topology: tpu7x:2x2x1
jax: 0.10.0
libtpu: 0.0.40
codegen_flags: <defaults>
</compile_context>

<pallas_src>
import functools

import jax
import jax.numpy as jnp
import numpy as np
from jax.experimental import pallas as pl
from jax.experimental.pallas import tpu as pltpu


# ---------------------------------------------------------------------------
# Fused MLP kernel:  Linear(640,128) -> LeakyReLU(0.2) -> Linear(128,128) -> Tanh
# ---------------------------------------------------------------------------
def _embedding_net128_kernel(x_ref, w1_ref, b1_ref, w2_ref, b2_ref, o_ref, *,
                             cast_to_bf16):
    x = x_ref[...]                       # (TILE_N, 640)
    w1 = w1_ref[...]                     # (640, 128)
    w2 = w2_ref[...]                     # (128, 128)

    if cast_to_bf16:                     # bf16 MXU operands, f32 accumulate
        x = x.astype(jnp.bfloat16)
        w1 = w1.astype(jnp.bfloat16)
        w2 = w2.astype(jnp.bfloat16)

    # Linear(640, 128) + bias (bias add in f32)
    h = jnp.dot(x, w1, preferred_element_type=jnp.float32) + b1_ref[...]

    # LeakyReLU(0.2): one max + one mul (identical to where(h >= 0, h, 0.2h))
    h = jnp.maximum(h, 0.2 * h)

    h2 = h.astype(jnp.bfloat16) if cast_to_bf16 else h

    # Linear(128, 128) + bias, then Tanh (EUP)
    y = jnp.dot(h2, w2, preferred_element_type=jnp.float32) + b2_ref[...]
    o_ref[...] = jnp.tanh(y)


def _round_up(x, m):
    return ((x + m - 1) // m) * m


def embedding_net128_forward(x, w1, b1, w2, b2, *, tile_n=512,
                             cast_to_bf16=True):
    """Forward pass of EmbeddingNet128.

    x : (..., 640) float32 (leading dims are flattened into a row axis)
    w1: (640, 128), b1: (128,)   -- first Linear (already transposed)
    w2: (128, 128), b2: (128,)   -- second Linear (already transposed)
    returns (..., 128) float32
    """
    orig_shape = x.shape
    K = orig_shape[-1]
    x2d = x.reshape(-1, K)
    N = x2d.shape[0]
    _, H = w1.shape
    _, D = w2.shape

    # Legal row tile: multiple of 8 (sublanes); never bigger than needed.
    tile_n = min(tile_n, _round_up(max(N, 1), 8))
    tile_n = _round_up(tile_n, 8)
    grid = (pl.cdiv(N, tile_n),)

    # Explicit VMEM budget (double-buffered x/out tiles + resident weights),
    # kept well under v7x's 64 MiB physical VMEM.
    bytes_needed = 4 * (2 * tile_n * K + K * H + H * D + 2 * tile_n * D
                        + H + D)
    vmem_limit = int(min(48 * 1024 * 1024,
                         max(4 * 1024 * 1024, 2 * bytes_needed)))

    kernel = functools.partial(_embedding_net128_kernel,
                               cast_to_bf16=cast_to_bf16)

    out2d = pl.pallas_call(
        kernel,
        out_shape=jax.ShapeDtypeStruct((N, D), jnp.float32),
        grid=grid,
        in_specs=[
            pl.BlockSpec((tile_n, K), lambda i: (i, 0)),   # x row-tile
            pl.BlockSpec((K, H), lambda i: (0, 0)),        # W1 (resident)
            pl.BlockSpec((1, H), lambda i: (0, 0)),        # b1
            pl.BlockSpec((H, D), lambda i: (0, 0)),        # W2 (resident)
            pl.BlockSpec((1, D), lambda i: (0, 0)),        # b2
        ],
        out_specs=pl.BlockSpec((tile_n, D), lambda i: (i, 0)),
        compiler_params=pltpu.CompilerParams(
            dimension_semantics=("parallel",),
            vmem_limit_bytes=vmem_limit,
        ),
    )(x2d, w1, b1.reshape(1, H), w2, b2.reshape(1, D))

    return out2d.reshape(orig_shape[:-1] + (D,))


# ---------------------------------------------------------------------------
# Deterministic parameter init (PyTorch nn.Linear default: U(-1/sqrt(fan_in), +))
# ---------------------------------------------------------------------------
def _uniform(key, shape, fan_in):
    bound = 1.0 / (fan_in ** 0.5)
    return jax.random.uniform(key, shape, jnp.float32, -bound, bound)


def _reference_forward(x, w1, b1, w2, b2):
    h = x @ w1 + b1
    h = jnp.maximum(h, 0.2 * h)
    return jnp.tanh(h @ w2 + b2)


if __name__ == "__main__":
    IN_FEATURES = 640
    HIDDEN = 128
    OUT_FEATURES = 128
    N = 16                                # small batch of rows

    key = jax.random.PRNGKey(0)
    kx, k1, k2, k3, k4 = jax.random.split(key, 5)

    x = jax.random.normal(kx, (N, IN_FEATURES), jnp.float32)
    w1 = _uniform(k1, (IN_FEATURES, HIDDEN), IN_FEATURES)
    b1 = _uniform(k2, (HIDDEN,), IN_FEATURES)
    w2 = _uniform(k3, (HIDDEN, OUT_FEATURES), HIDDEN)
    b2 = _uniform(k4, (OUT_FEATURES,), HIDDEN)

    # tile_n=8 -> grid=(2,): exercises the row-tiled pipeline at small N.
    out = embedding_net128_forward(x, w1, b1, w2, b2, tile_n=8)
    out = jax.block_until_ready(out)

    ref = jax.block_until_ready(_reference_forward(x, w1, b1, w2, b2))

    assert out.shape == (N, OUT_FEATURES)
    assert np.all(np.isfinite(np.asarray(out)))
    # bf16 MXU operands + f32 accumulation -> loose tolerance vs f32 reference
    assert np.allclose(np.asarray(out), np.asarray(ref), atol=2e-2), (
        float(np.max(np.abs(np.asarray(out) - np.asarray(ref)))))

    print("KERNEL_OK")
</pallas_src>

<mosaic_0001>
module attributes {stable_mosaic.version = 11 : i64} {
  func.func @_embedding_net128_kernel(%arg0: i32, %arg1: memref<8x640xf32, #tpu.memory_space<vmem>>, %arg2: memref<640x128xf32, #tpu.memory_space<vmem>>, %arg3: memref<1x128xf32, #tpu.memory_space<vmem>>, %arg4: memref<128x128xf32, #tpu.memory_space<vmem>>, %arg5: memref<1x128xf32, #tpu.memory_space<vmem>>, %arg6: memref<8x128xf32, #tpu.memory_space<vmem>>) attributes {dimension_semantics = [#tpu.dimension_semantics<parallel>], iteration_bounds = array<i64: 2>, scalar_prefetch = 0 : i64, scratch_operands = 0 : i64, tpu.core_type = #tpu.core_type<tc>, window_params = [{transform_indices = @transform_0, window_bounds = array<i64: 8, 640>}, {pipeline_mode = #tpu.pipeline_mode<synchronous>, transform_indices = @transform_1, window_bounds = array<i64: 640, 128>}, {pipeline_mode = #tpu.pipeline_mode<synchronous>, transform_indices = @transform_2, window_bounds = array<i64: 1, 128>}, {pipeline_mode = #tpu.pipeline_mode<synchronous>, transform_indices = @transform_3, window_bounds = array<i64: 128, 128>}, {pipeline_mode = #tpu.pipeline_mode<synchronous>, transform_indices = @transform_4, window_bounds = array<i64: 1, 128>}, {transform_indices = @transform_5, window_bounds = array<i64: 8, 128>}]} {
    %c0 = arith.constant 0 : index
    %c0_0 = arith.constant 0 : index
    %0 = vector.load %arg1[%c0, %c0_0] : memref<8x640xf32, #tpu.memory_space<vmem>>, vector<8x640xf32>
    %c0_1 = arith.constant 0 : index
    %c0_2 = arith.constant 0 : index
    %1 = vector.load %arg2[%c0_1, %c0_2] : memref<640x128xf32, #tpu.memory_space<vmem>>, vector<640x128xf32>
    %c0_3 = arith.constant 0 : index
    %c0_4 = arith.constant 0 : index
    %2 = vector.load %arg4[%c0_3, %c0_4] : memref<128x128xf32, #tpu.memory_space<vmem>>, vector<128x128xf32>
    %3 = arith.truncf %0 : vector<8x640xf32> to vector<8x640xbf16>
    %4 = arith.truncf %1 : vector<640x128xf32> to vector<640x128xbf16>
    %5 = arith.truncf %2 : vector<128x128xf32> to vector<128x128xbf16>
    %cst = arith.constant dense<0.000000e+00> : vector<8x128xf32>
    %6 = tpu.matmul %3, %4, %cst {dimension_numbers = #tpu.dot_dimension_numbers<[1], [0], [0], [1], [0, 0, 1, 1], [], []>} : vector<8x640xbf16>, vector<640x128xbf16>, vector<8x128xf32> -> vector<8x128xf32>
    %c0_5 = arith.constant 0 : index
    %c0_6 = arith.constant 0 : index
    %7 = vector.load %arg3[%c0_5, %c0_6] : memref<1x128xf32, #tpu.memory_space<vmem>>, vector<1x128xf32>
    %8 = vector.broadcast %7 : vector<1x128xf32> to vector<8x128xf32>
    %9 = arith.addf %6, %8 : vector<8x128xf32>
    %cst_7 = arith.constant 2.000000e-01 : f32
    %10 = vector.broadcast %cst_7 : f32 to vector<8x128xf32>
    %11 = arith.mulf %10, %9 : vector<8x128xf32>
    %12 = arith.maximumf %9, %11 : vector<8x128xf32>
    %13 = arith.truncf %12 : vector<8x128xf32> to vector<8x128xbf16>
    %cst_8 = arith.constant dense<0.000000e+00> : vector<8x128xf32>
    %14 = tpu.matmul %13, %5, %cst_8 {dimension_numbers = #tpu.dot_dimension_numbers<[1], [0], [0], [1], [0, 0, 1, 1], [], []>} : vector<8x128xbf16>, vector<128x128xbf16>, vector<8x128xf32> -> vector<8x128xf32>
    %c0_9 = arith.constant 0 : index
    %c0_10 = arith.constant 0 : index
    %15 = vector.load %arg5[%c0_9, %c0_10] : memref<1x128xf32, #tpu.memory_space<vmem>>, vector<1x128xf32>
    %16 = vector.broadcast %15 : vector<1x128xf32> to vector<8x128xf32>
    %17 = arith.addf %14, %16 : vector<8x128xf32>
    %18 = math.tanh %17 : vector<8x128xf32>
    %c0_11 = arith.constant 0 : index
    %c0_12 = arith.constant 0 : index
    %19 = vector.load %arg6[%c0_11, %c0_12] : memref<8x128xf32, #tpu.memory_space<vmem>>, vector<8x128xf32>
    tpu.vector_store %arg6[%c0_11, %c0_12], %18 {strides = array<i32>} : memref<8x128xf32, #tpu.memory_space<vmem>>, vector<8x128xf32>,
    return
  }
  func.func @transform_0(%arg0: i32) -> (i32, i32) {
    %c0_i32 = arith.constant 0 : i32
    %c0_i32_0 = arith.constant 0 : i32
    return %arg0, %c0_i32 : i32, i32
  }
  func.func @transform_1(%arg0: i32) -> (i32, i32) {
    %c0_i32 = arith.constant 0 : i32
    %c0_i32_0 = arith.constant 0 : i32
    %c0_i32_1 = arith.constant 0 : i32
    return %c0_i32, %c0_i32_0 : i32, i32
  }
  func.func @transform_2(%arg0: i32) -> (i32, i32) {
    %c0_i32 = arith.constant 0 : i32
    %c0_i32_0 = arith.constant 0 : i32
    %c0_i32_1 = arith.constant 0 : i32
    return %c0_i32, %c0_i32_0 : i32, i32
  }
  func.func @transform_3(%arg0: i32) -> (i32, i32) {
    %c0_i32 = arith.constant 0 : i32
    %c0_i32_0 = arith.constant 0 : i32
    %c0_i32_1 = arith.constant 0 : i32
    return %c0_i32, %c0_i32_0 : i32, i32
  }
  func.func @transform_4(%arg0: i32) -> (i32, i32) {
    %c0_i32 = arith.constant 0 : i32
    %c0_i32_0 = arith.constant 0 : i32
    %c0_i32_1 = arith.constant 0 : i32
    return %c0_i32, %c0_i32_0 : i32, i32
  }
  func.func @transform_5(%arg0: i32) -> (i32, i32) {
    %c0_i32 = arith.constant 0 : i32
    %c0_i32_0 = arith.constant 0 : i32
    return %arg0, %c0_i32 : i32, i32
  }
}

</mosaic_0001>

<llo_original>
// kernel: tpu_custom_call.1
$region0: #{tpu_custom_call.1}
  #allocation0 [shape = 'u32[]', space=smem, size = 0x4, offset = 0x4, fixed_abs, tag = 'smem constant byte address 0x4 - core index']
  #allocation1 [shape = 'u32[144,128]{1,0:T(1,128)}', space=vmem, size = 0x12000, scoped, tag = 'internal scratch']
  %s0 = inlined_call_operand.hbm [shape: f32[16,640], index: 0, kind: input, shape index: {}]
  %s1 = inlined_call_operand.hbm [shape: f32[640,128], index: 1, kind: input, shape index: {}]
  %s2 = inlined_call_operand.vmem [shape: f32[1,128], index: 2, kind: input, shape index: {}]
  %s3 = inlined_call_operand.hbm [shape: f32[128,128], index: 3, kind: input, shape index: {}]
  %s4 = inlined_call_operand.vmem [shape: f32[1,128], index: 4, kind: input, shape index: {}]
  %s5 = inlined_call_operand.hbm [shape: f32[16,128], index: 5, kind: output, shape index: {}]
  %s6 = sld [smem:[#allocation0]]
  $region65: #{tpu_custom_call.1} parent=0
    _
  %s8 = ssub.s32 1, %s6
  %s9 = scalar_select 0, %s8, %s6
  $region1: #{tpu_custom_call.1} parent=0
    #allocation2 [shape = 'u8[40960]{0}', space=vmem, size = 0xa000, scoped, tag = 'input window, operand 0']
    #allocation3 [shape = 's32[2]{0}', space=sflag, size = 0x8, scoped, tag = 'scoped memory for tpu_custom_call.1']
    #allocation4 [shape = 's32[2]{0}', space=sflag, size = 0x8, scoped, tag = 'scoped memory for tpu_custom_call.1']
    #allocation5 [shape = 'u8[327680]{0}', space=vmem, size = 0x50000, scoped, tag = 'input window, operand 1, single buffered']
    #allocation6 [shape = 's32[1]{0}', space=sflag, size = 0x4, scoped, tag = 'scoped memory for tpu_custom_call.1']
    #allocation7 [shape = 'u8[65536]{0}', space=vmem, size = 0x10000, scoped, tag = 'input window, operand 3, single buffered']
    #allocation8 [shape = 'u8[8192]{0}', space=vmem, size = 0x2000, scoped, tag = 'output window, operand 0']
    %10 = vsyncpa [#allocation3], 0
    %s11 = scalar_lea.sflag [#allocation3], 1
    %12 = vsyncpa %s11, 0
    %13 = vsyncpa [#allocation6], 0
    %14 = vsyncpa [#allocation4], 0
    %s15 = scalar_lea.sflag [#allocation4], 1
    %16 = vsyncpa %s15, 0
    loop: start=0, step=1, limit=4
    $region2: #{tpu_custom_call.1} parent=1 // loop_pre_header
      _
    $region3: #{tpu_custom_call.1} parent=1 // loop_header
      %s18 = sphi 0, %s22
      %p19 = scmp.ge.s32.totalorder %s18, 4
      %s28 = sphi 0, %s30
      %s31 = sphi 0, %s28
      %s32 = sphi 0, %s31
      %s48 = sphi 0, %s32
      %s52 = sphi 0, %s52
      %s54 = sphi 0, %s52
      %s55 = sphi 0, %s54
      %s69 = sphi 0, %s55
      %s73 = sphi 0, %s73
      %s75 = sphi 0, %s73
      %s76 = sphi 0, %s75
      %s90 = sphi 0, %s76
      %s94 = sphi 0, %s94
      %s96 = sphi 0, %s94
      %s97 = sphi 0, %s96
      %s111 = sphi 0, %s97
      %s115 = sphi 0, %s115
      %s117 = sphi 0, %s115
      %s118 = sphi 0, %s117
      %s132 = sphi 0, %s118
      %s138 = sphi 0, %s140
      %s141 = sphi 0, %s138
      %s142 = sphi 0, %s141
      %s158 = sphi 0, %s142
    $region4: #{tpu_custom_call.1} parent=1 // loop_header_branch
      %21 = sbr.rel (%p19) target = $region8
    $region5: #{tpu_custom_call.1} parent=1 // loop_body
      %s23 = ssub.s32 %s18, 1
      %s24 = ssub.s32 %s18, 2
      %s25 = sadd.s32 %s18, 1
      %s26 = ssub.s32 %s18, %s25
      %p27 = scmp.eq.s32.totalorder %s26, 0
      %s29 = sadd.s32 %s28, 1
      %s30 = scalar_select %p27, %s28, %s29
      %p33 = pneg %p27
      %p34 = scmp.eq.s32.totalorder %s18, 1
      %p35 = por %p33, %p34
      %p36 = scmp.ne.s32.totalorder %s28, %s31
      %p37 = scmp.eq.s32.totalorder %s18, 0
      %p38 = por %p36, %p37
      %p39 = scmp.ne.s32.totalorder %s28, %s31
      %p40 = scmp.eq.s32.totalorder %s23, 1
      %p41 = por %p39, %p40
      %p42 = scmp.ne.s32.totalorder %s31, %s32
      %p43 = scmp.eq.s32.totalorder %s23, 0
      %p44 = por %p42, %p43
      %p45 = scmp.ne.s32.totalorder %s31, %s32
      %p46 = scmp.eq.s32.totalorder %s24, 1
      %p47 = por %p45, %p46
      %p49 = scmp.ne.s32.totalorder %s32, %s48
      %p50 = scmp.eq.s32.totalorder %s24, 0
      %p51 = por %p49, %p50
      %s53 = sadd.s32 %s52, 1
      %p56 = scmp.eq.s32.totalorder %s18, 1
      %p57 = scmp.ne.s32.totalorder %s52, %s54
      %p58 = scmp.eq.s32.totalorder %s18, 0
      %p59 = por %p57, %p58
      %p60 = scmp.ne.s32.totalorder %s52, %s54
      %p61 = scmp.eq.s32.totalorder %s23, 1
      %p62 = por %p60, %p61
      %p63 = scmp.ne.s32.totalorder %s54, %s55
      %p64 = scmp.eq.s32.totalorder %s23, 0
      %p65 = por %p63, %p64
      %p66 = scmp.ne.s32.totalorder %s54, %s55
      %p67 = scmp.eq.s32.totalorder %s24, 1
      %p68 = por %p66, %p67
      %p70 = scmp.ne.s32.totalorder %s55, %s69
      %p71 = scmp.eq.s32.totalorder %s24, 0
      %p72 = por %p70, %p71
      %s74 = sadd.s32 %s73, 1
      %p77 = scmp.eq.s32.totalorder %s18, 1
      %p78 = scmp.ne.s32.totalorder %s73, %s75
      %p79 = scmp.eq.s32.totalorder %s18, 0
      %p80 = por %p78, %p79
      %p81 = scmp.ne.s32.totalorder %s73, %s75
      %p82 = scmp.eq.s32.totalorder %s23, 1
      %p83 = por %p81, %p82
      %p84 = scmp.ne.s32.totalorder %s75, %s76
      %p85 = scmp.eq.s32.totalorder %s23, 0
      %p86 = por %p84, %p85
      %p87 = scmp.ne.s32.totalorder %s75, %s76
      %p88 = scmp.eq.s32.totalorder %s24, 1
      %p89 = por %p87, %p88
      %p91 = scmp.ne.s32.totalorder %s76, %s90
      %p92 = scmp.eq.s32.totalorder %s24, 0
      %p93 = por %p91, %p92
      %s95 = sadd.s32 %s94, 1
      %p98 = scmp.eq.s32.totalorder %s18, 1
      %p99 = scmp.ne.s32.totalorder %s94, %s96
      %p100 = scmp.eq.s32.totalorder %s18, 0
      %p101 = por %p99, %p100
      %p102 = scmp.ne.s32.totalorder %s94, %s96
      %p103 = scmp.eq.s32.totalorder %s23, 1
      %p104 = por %p102, %p103
      %p105 = scmp.ne.s32.totalorder %s96, %s97
      %p106 = scmp.eq.s32.totalorder %s23, 0
      %p107 = por %p105, %p106
      %p108 = scmp.ne.s32.totalorder %s96, %s97
      %p109 = scmp.eq.s32.totalorder %s24, 1
      %p110 = por %p108, %p109
      %p112 = scmp.ne.s32.totalorder %s97, %s111
      %p113 = scmp.eq.s32.totalorder %s24, 0
      %p114 = por %p112, %p113
      %s116 = sadd.s32 %s115, 1
      %p119 = scmp.eq.s32.totalorder %s18, 1
      %p120 = scmp.ne.s32.totalorder %s115, %s117
      %p121 = scmp.eq.s32.totalorder %s18, 0
      %p122 = por %p120, %p121
      %p123 = scmp.ne.s32.totalorder %s115, %s117
      %p124 = scmp.eq.s32.totalorder %s23, 1
      %p125 = por %p123, %p124
      %p126 = scmp.ne.s32.totalorder %s117, %s118
      %p127 = scmp.eq.s32.totalorder %s23, 0
      %p128 = por %p126, %p127
      %p129 = scmp.ne.s32.totalorder %s117, %s118
      %p130 = scmp.eq.s32.totalorder %s24, 1
      %p131 = por %p129, %p130
      %p133 = scmp.ne.s32.totalorder %s118, %s132
      %p134 = scmp.eq.s32.totalorder %s24, 0
      %p135 = por %p133, %p134
      %s136 = ssub.s32 %s18, %s25
      %p137 = scmp.eq.s32.totalorder %s136, 0
      %s139 = sadd.s32 %s138, 1
      %s140 = scalar_select %p137, %s138, %s139
      %p143 = pneg %p137
      %p144 = scmp.eq.s32.totalorder %s18, 1
      %p145 = por %p143, %p144
      %p146 = scmp.ne.s32.totalorder %s138, %s141
      %p147 = scmp.eq.s32.totalorder %s18, 0
      %p148 = por %p146, %p147
      %p149 = scmp.ne.s32.totalorder %s138, %s141
      %p150 = scmp.eq.s32.totalorder %s23, 1
      %p151 = por %p149, %p150
      %p152 = scmp.ne.s32.totalorder %s141, %s142
      %p153 = scmp.eq.s32.totalorder %s23, 0
      %p154 = por %p152, %p153
      %p155 = scmp.ne.s32.totalorder %s141, %s142
      %p156 = scmp.eq.s32.totalorder %s24, 1
      %p157 = por %p155, %p156
      %p159 = scmp.ne.s32.totalorder %s142, %s158
      %p160 = scmp.eq.s32.totalorder %s24, 0
      %p161 = por %p159, %p160
      %p162 = scmp.le.s32.totalorder 1, %s18
      %p163 = scmp.lt.s32.totalorder %s18, 3
      %p164 = pnand %p162, %p163
      %p165 = pneg %p164
      // Predicated region
      $region9: #{tpu_custom_call.1} parent=5 // pred_check
        _
      $region10: #{tpu_custom_call.1} parent=5 // pred_check_branch
        %167 = sbr.rel (%p164) target = $region12
      $region11: #{tpu_custom_call.1} parent=5 // pred_region
        %s168 = ssub.s32 %s18, 1
        // Predicated region
        $region13: #{tpu_custom_call.1} parent=11 // pred_check
          %p169 = pneg %p65
        $region14: #{tpu_custom_call.1} parent=11 // pred_check_branch
          %171 = sbr.rel (%p169) target = $region16
        $region15: #{tpu_custom_call.1} parent=11 // pred_region
          %s173 = ssub.s32 10240, 10240
          %174 = vsyncadd [#allocation6], %s173
          %s175 = sshll.u32 [#allocation5], 4
          %s176 = int_to_ptr.vmem [resolvable:$true] %s175
          %181 = dma.hbm_to_vmem [thread:$0]  %s1, 10240, %s176, [#allocation6], 128, 128, 8
        $region16: #{tpu_custom_call.1} parent=11 // pred_fallthru
          _
        // Predicated region
        $region17: #{tpu_custom_call.1} parent=11 // pred_check
          %p182 = pneg %p86
        $region18: #{tpu_custom_call.1} parent=11 // pred_check_branch
          %184 = sbr.rel (%p182) target = $region20
        $region19: #{tpu_custom_call.1} parent=11 // pred_region
          _
        $region20: #{tpu_custom_call.1} parent=11 // pred_fallthru
          _
        // Predicated region
        $region21: #{tpu_custom_call.1} parent=11 // pred_check
          %p185 = pneg %p107
        $region22: #{tpu_custom_call.1} parent=11 // pred_check_branch
          %187 = sbr.rel (%p185) target = $region24
        $region23: #{tpu_custom_call.1} parent=11 // pred_region
          %s189 = ssub.s32 2048, 2048
          %190 = vsyncadd [#allocation6], %s189
          %s191 = sshll.u32 [#allocation7], 4
          %s192 = int_to_ptr.vmem [resolvable:$true] %s191
          %197 = dma.hbm_to_vmem [thread:$0]  %s3, 2048, %s192, [#allocation6], 128, 128, 8
        $region24: #{tpu_custom_call.1} parent=11 // pred_fallthru
          _
        // Predicated region
        $region25: #{tpu_custom_call.1} parent=11 // pred_check
          %p198 = pneg %p128
        $region26: #{tpu_custom_call.1} parent=11 // pred_check_branch
          %200 = sbr.rel (%p198) target = $region28
        $region27: #{tpu_custom_call.1} parent=11 // pred_region
          _
        $region28: #{tpu_custom_call.1} parent=11 // pred_fallthru
          _
      $region12: #{tpu_custom_call.1} parent=5 // pred_fallthru
        _
      %p201 = scmp.lt.s32.totalorder %s18, 2
      // Predicated region
      $region29: #{tpu_custom_call.1} parent=5 // pred_check
        %p202 = pneg %p201
      $region30: #{tpu_custom_call.1} parent=5 // pred_check_branch
        %204 = sbr.rel (%p202) target = $region32
      $region31: #{tpu_custom_call.1} parent=5 // pred_region
        // Predicated region
        $region33: #{tpu_custom_call.1} parent=31 // pred_check
          %p205 = pneg %p38
        $region34: #{tpu_custom_call.1} parent=31 // pred_check_branch
          %207 = sbr.rel (%p205) target = $region36
        $region35: #{tpu_custom_call.1} parent=31 // pred_region
          %s208 = sand.u32 %s28, 1
          %s209 = scalar_lea.sflag [#allocation3], %s208
          %s210 = sand.u32 %s28, 1
          %s211 = smul.addr %s210, 40
          %s212 = scalar_lea.vmem [#allocation2], %s211
          %s214 = ssub.s32 640, 640
          %215 = vsyncadd %s209, %s214
          %s216 = smul.addr %s18, 5
          %s217 = smul.addr %s216, 128
          %s218 = scalar_lea.hbm %s0, %s217
          %s220 = sshll.u32 %s212, 4
          %s221 = int_to_ptr.vmem [resolvable:$true] %s220
          %223 = dma.hbm_to_vmem [thread:$0]  %s218, 640, %s221, %s209
        $region36: #{tpu_custom_call.1} parent=31 // pred_fallthru
          _
      $region32: #{tpu_custom_call.1} parent=5 // pred_fallthru
        _
      %p224 = scmp.le.s32.totalorder 1, %s18
      %p225 = scmp.lt.s32.totalorder %s18, 3
      %p226 = pnand %p224, %p225
      %p227 = pneg %p226
      // Predicated region
      $region37: #{tpu_custom_call.1} parent=5 // pred_check
        _
      $region38: #{tpu_custom_call.1} parent=5 // pred_check_branch
        %229 = sbr.rel (%p226) target = $region40
      $region39: #{tpu_custom_call.1} parent=5 // pred_region
        %s230 = ssub.s32 %s18, 1
        %s231 = sand.u32 %s31, 1
        %s232 = scalar_lea.sflag [#allocation3], %s231
        %s233 = sand.u32 %s31, 1
        %s234 = smul.addr %s233, 40
        %s235 = scalar_lea.vmem [#allocation2], %s234
        // Predicated region
        $region41: #{tpu_custom_call.1} parent=39 // pred_check
          %p236 = pneg %p44
        $region42: #{tpu_custom_call.1} parent=39 // pred_check_branch
          %238 = sbr.rel (%p236) target = $region44
        $region43: #{tpu_custom_call.1} parent=39 // pred_region
          %239 = dma.done %s232, 640
        $region44: #{tpu_custom_call.1} parent=39 // pred_fallthru
          _
        // Predicated region
        $region45: #{tpu_custom_call.1} parent=39 // pred_check
          %p240 = pneg %p65
        $region46: #{tpu_custom_call.1} parent=39 // pred_check_branch
          %242 = sbr.rel (%p240) target = $region48
        $region47: #{tpu_custom_call.1} parent=39 // pred_region
          %243 = dma.done [#allocation6], 10240
        $region48: #{tpu_custom_call.1} parent=39 // pred_fallthru
          _
        // Predicated region
        $region49: #{tpu_custom_call.1} parent=39 // pred_check
          %p244 = pneg %p107
        $region50: #{tpu_custom_call.1} parent=39 // pred_check_branch
          %246 = sbr.rel (%p244) target = $region52
        $region51: #{tpu_custom_call.1} parent=39 // pred_region
          %247 = dma.done [#allocation6], 2048
        $region52: #{tpu_custom_call.1} parent=39 // pred_fallthru
          _
        %s248 = sand.u32 %s31, 1
        %s249 = scalar_lea.sflag [#allocation3], %s248
        %s250 = sand.u32 %s31, 1
        %s251 = smul.addr %s250, 40
        %s252 = scalar_lea.vmem [#allocation2], %s251
        %p253 = pneg %p44
        %p254 = pneg %p41
        %p255 = pneg %p65
        %p256 = pneg %p62
        %p257 = pneg %p86
        %p258 = pneg %p83
        %p259 = pneg %p107
        %p260 = pneg %p104
        %p261 = pneg %p128
        %p262 = pneg %p125
        %p263 = pneg %p154
        %p264 = pneg %p151
        %s265 = sand.u32 %s141, 1
        %s266 = scalar_lea.sflag [#allocation4], %s265
        %s267 = sand.u32 %s141, 1
        %s268 = smul.addr %s267, 8
        %s269 = scalar_lea.vmem [#allocation8], %s268
        %v271 = vld [vmem:[%s235] sm:$0xff]
        %v272 = vld [vmem:[%s235 + $0x8] sm:$0xff]
        %v273 = vld [vmem:[%s235 + $0x10] sm:$0xff]
        %v274 = vld [vmem:[%s235 + $0x18] sm:$0xff]
        %v275 = vld [vmem:[%s235 + $0x20] sm:$0xff]
        %v276 = vld [vmem:[#allocation5] sm:$0xff]
        %v277 = vld [vmem:[#allocation5 + $0x8] sm:$0xff]
        %v278 = vld [vmem:[#allocation5 + $0x10] sm:$0xff]
        %v279 = vld [vmem:[#allocation5 + $0x18] sm:$0xff]
        %v280 = vld [vmem:[#allocation5 + $0x20] sm:$0xff]
        %v281 = vld [vmem:[#allocation5 + $0x28] sm:$0xff]
        %v282 = vld [vmem:[#allocation5 + $0x30] sm:$0xff]
        %v283 = vld [vmem:[#allocation5 + $0x38] sm:$0xff]
        %v284 = vld [vmem:[#allocation5 + $0x40] sm:$0xff]
        %v285 = vld [vmem:[#allocation5 + $0x48] sm:$0xff]
        %v286 = vld [vmem:[#allocation5 + $0x50] sm:$0xff]
        %v287 = vld [vmem:[#allocation5 + $0x58] sm:$0xff]
        %v288 = vld [vmem:[#allocation5 + $0x60] sm:$0xff]
        %v289 = vld [vmem:[#allocation5 + $0x68] sm:$0xff]
        %v290 = vld [vmem:[#allocation5 + $0x70] sm:$0xff]
        %v291 = vld [vmem:[#allocation5 + $0x78] sm:$0xff]
        %v292 = vld [vmem:[#allocation5 + $0x80] sm:$0xff]
        %v293 = vld [vmem:[#allocation5 + $0x88] sm:$0xff]
        %v294 = vld [vmem:[#allocation5 + $0x90] sm:$0xff]
        %v295 = vld [vmem:[#allocation5 + $0x98] sm:$0xff]
        %v296 = vld [vmem:[#allocation5 + $0xa0] sm:$0xff]
        %v297 = vld [vmem:[#allocation5 + $0xa8] sm:$0xff]
        %v298 = vld [vmem:[#allocation5 + $0xb0] sm:$0xff]
        %v299 = vld [vmem:[#allocation5 + $0xb8] sm:$0xff]
        %v300 = vld [vmem:[#allocation5 + $0xc0] sm:$0xff]
        %v301 = vld [vmem:[#allocation5 + $0xc8] sm:$0xff]
        %v302 = vld [vmem:[#allocation5 + $0xd0] sm:$0xff]
        %v303 = vld [vmem:[#allocation5 + $0xd8] sm:$0xff]
        %v304 = vld [vmem:[#allocation5 + $0xe0] sm:$0xff]
        %v305 = vld [vmem:[#allocation5 + $0xe8] sm:$0xff]
        %v306 = vld [vmem:[#allocation5 + $0xf0] sm:$0xff]
        %v307 = vld [vmem:[#allocation5 + $0xf8] sm:$0xff]
        %v308 = vld [vmem:[#allocation5 + $0x100] sm:$0xff]
        %v309 = vld [vmem:[#allocation5 + $0x108] sm:$0xff]
        %v310 = vld [vmem:[#allocation5 + $0x110] sm:$0xff]
        %v311 = vld [vmem:[#allocation5 + $0x118] sm:$0xff]
        %v312 = vld [vmem:[#allocation5 + $0x120] sm:$0xff]
        %v313 = vld [vmem:[#allocation5 + $0x128] sm:$0xff]
        %v314 = vld [vmem:[#allocation5 + $0x130] sm:$0xff]
        %v315 = vld [vmem:[#allocation5 + $0x138] sm:$0xff]
        %v316 = vld [vmem:[#allocation5 + $0x140] sm:$0xff]
        %v317 = vld [vmem:[#allocation5 + $0x148] sm:$0xff]
        %v318 = vld [vmem:[#allocation5 + $0x150] sm:$0xff]
        %v319 = vld [vmem:[#allocation5 + $0x158] sm:$0xff]
        %v320 = vld [vmem:[#allocation5 + $0x160] sm:$0xff]
        %v321 = vld [vmem:[#allocation5 + $0x168] sm:$0xff]
        %v322 = vld [vmem:[#allocation5 + $0x170] sm:$0xff]
        %v323 = vld [vmem:[#allocation5 + $0x178] sm:$0xff]
        %v324 = vld [vmem:[#allocation5 + $0x180] sm:$0xff]
        %v325 = vld [vmem:[#allocation5 + $0x188] sm:$0xff]
        %v326 = vld [vmem:[#allocation5 + $0x190] sm:$0xff]
        %v327 = vld [vmem:[#allocation5 + $0x198] sm:$0xff]
        %v328 = vld [vmem:[#allocation5 + $0x1a0] sm:$0xff]
        %v329 = vld [vmem:[#allocation5 + $0x1a8] sm:$0xff]
        %v330 = vld [vmem:[#allocation5 + $0x1b0] sm:$0xff]
        %v331 = vld [vmem:[#allocation5 + $0x1b8] sm:$0xff]
        %v332 = vld [vmem:[#allocation5 + $0x1c0] sm:$0xff]
        %v333 = vld [vmem:[#allocation5 + $0x1c8] sm:$0xff]
        %v334 = vld [vmem:[#allocation5 + $0x1d0] sm:$0xff]
        %v335 = vld [vmem:[#allocation5 + $0x1d8] sm:$0xff]
        %v336 = vld [vmem:[#allocation5 + $0x1e0] sm:$0xff]
        %v337 = vld [vmem:[#allocation5 + $0x1e8] sm:$0xff]
        %v338 = vld [vmem:[#allocation5 + $0x1f0] sm:$0xff]
        %v339 = vld [vmem:[#allocation5 + $0x1f8] sm:$0xff]
        %v340 = vld [vmem:[#allocation5 + $0x200] sm:$0xff]
        %v341 = vld [vmem:[#allocation5 + $0x208] sm:$0xff]
        %v342 = vld [vmem:[#allocation5 + $0x210] sm:$0xff]
        %v343 = vld [vmem:[#allocation5 + $0x218] sm:$0xff]
        %v344 = vld [vmem:[#allocation5 + $0x220] sm:$0xff]
        %v345 = vld [vmem:[#allocation5 + $0x228] sm:$0xff]
        %v346 = vld [vmem:[#allocation5 + $0x230] sm:$0xff]
        %v347 = vld [vmem:[#allocation5 + $0x238] sm:$0xff]
        %v348 = vld [vmem:[#allocation5 + $0x240] sm:$0xff]
        %v349 = vld [vmem:[#allocation5 + $0x248] sm:$0xff]
        %v350 = vld [vmem:[#allocation5 + $0x250] sm:$0xff]
        %v351 = vld [vmem:[#allocation5 + $0x258] sm:$0xff]
        %v352 = vld [vmem:[#allocation5 + $0x260] sm:$0xff]
        %v353 = vld [vmem:[#allocation5 + $0x268] sm:$0xff]
        %v354 = vld [vmem:[#allocation5 + $0x270] sm:$0xff]
        %v355 = vld [vmem:[#allocation5 + $0x278] sm:$0xff]
        %v356 = vld [vmem:[#allocation7] sm:$0xff]
        %v357 = vld [vmem:[#allocation7 + $0x8] sm:$0xff]
        %v358 = vld [vmem:[#allocation7 + $0x10] sm:$0xff]
        %v359 = vld [vmem:[#allocation7 + $0x18] sm:$0xff]
        %v360 = vld [vmem:[#allocation7 + $0x20] sm:$0xff]
        %v361 = vld [vmem:[#allocation7 + $0x28] sm:$0xff]
        %v362 = vld [vmem:[#allocation7 + $0x30] sm:$0xff]
        %v363 = vld [vmem:[#allocation7 + $0x38] sm:$0xff]
        %v364 = vld [vmem:[#allocation7 + $0x40] sm:$0xff]
        %v365 = vld [vmem:[#allocation7 + $0x48] sm:$0xff]
        %v366 = vld [vmem:[#allocation7 + $0x50] sm:$0xff]
        %v367 = vld [vmem:[#allocation7 + $0x58] sm:$0xff]
        %v368 = vld [vmem:[#allocation7 + $0x60] sm:$0xff]
        %v369 = vld [vmem:[#allocation7 + $0x68] sm:$0xff]
        %v370 = vld [vmem:[#allocation7 + $0x70] sm:$0xff]
        %v371 = vld [vmem:[#allocation7 + $0x78] sm:$0xff]
        %v372 = vpack.c.bf16 %v271, %v271
        %v373 = vpack.c.bf16 %v272, %v272
        %v374 = vpack.c.bf16 %v273, %v273
        %v375 = vpack.c.bf16 %v274, %v274
        %v376 = vpack.c.bf16 %v275, %v275
        %v377 = vpack.c.bf16 %v277, %v276
        %v378 = vpack.c.bf16 %v279, %v278
        %v379 = vpack.c.bf16 %v281, %v280
        %v380 = vpack.c.bf16 %v283, %v282
        %v381 = vpack.c.bf16 %v285, %v284
        %v382 = vpack.c.bf16 %v287, %v286
        %v383 = vpack.c.bf16 %v289, %v288
        %v384 = vpack.c.bf16 %v291, %v290
        %v385 = vpack.c.bf16 %v293, %v292
        %v386 = vpack.c.bf16 %v295, %v294
        %v387 = vpack.c.bf16 %v297, %v296
        %v388 = vpack.c.bf16 %v299, %v298
        %v389 = vpack.c.bf16 %v301, %v300
        %v390 = vpack.c.bf16 %v303, %v302
        %v391 = vpack.c.bf16 %v305, %v304
        %v392 = vpack.c.bf16 %v307, %v306
        %v393 = vpack.c.bf16 %v309, %v308
        %v394 = vpack.c.bf16 %v311, %v310
        %v395 = vpack.c.bf16 %v313, %v312
        %v396 = vpack.c.bf16 %v315, %v314
        %v397 = vpack.c.bf16 %v317, %v316
        %v398 = vpack.c.bf16 %v319, %v318
        %v399 = vpack.c.bf16 %v321, %v320
        %v400 = vpack.c.bf16 %v323, %v322
        %v401 = vpack.c.bf16 %v325, %v324
        %v402 = vpack.c.bf16 %v327, %v326
        %v403 = vpack.c.bf16 %v329, %v328
        %v404 = vpack.c.bf16 %v331, %v330
        %v405 = vpack.c.bf16 %v333, %v332
        %v406 = vpack.c.bf16 %v335, %v334
        %v407 = vpack.c.bf16 %v337, %v336
        %v408 = vpack.c.bf16 %v339, %v338
        %v409 = vpack.c.bf16 %v341, %v340
        %v410 = vpack.c.bf16 %v343, %v342
        %v411 = vpack.c.bf16 %v345, %v344
        %v412 = vpack.c.bf16 %v347, %v346
        %v413 = vpack.c.bf16 %v349, %v348
        %v414 = vpack.c.bf16 %v351, %v350
        %v415 = vpack.c.bf16 %v353, %v352
        %v416 = vpack.c.bf16 %v355, %v354
        %v417 = vpack.c.bf16 %v357, %v356
        %v418 = vpack.c.bf16 %v359, %v358
        %v419 = vpack.c.bf16 %v361, %v360
        %v420 = vpack.c.bf16 %v363, %v362
        %v421 = vpack.c.bf16 %v365, %v364
        %v422 = vpack.c.bf16 %v367, %v366
        %v423 = vpack.c.bf16 %v369, %v368
        %v424 = vpack.c.bf16 %v371, %v370
        %v425 = vld [vmem:[%s2] sm:$0x1]
        %v427 = vlaneseq
        %v428 = vshrl.u32 %v427, 7
        %v429 = vsub.s32 0, %v428
        %v430 = vrot.slane %v425, %v429
        %432 = vmatprep.subr.bf16.mxu0 0
        %433 = vmatpush1.bf16.msra.mxu0 %v377
        %434 = vmatprep.subr.bf16.mxu0 0
        %435 = vmatpush1.bf16.msra.mxu0 %v378
        %436 = vmatprep.subr.bf16.mxu0 0
        %437 = vmatpush1.bf16.msra.mxu0 %v379
        %438 = vmatprep.subr.bf16.mxu0 0
        %439 = vmatpush1.bf16.msra.mxu0 %v380
        %440 = vmatprep.subr.bf16.mxu0 0
        %441 = vmatpush1.bf16.msra.mxu0 %v381
        %442 = vmatprep.subr.bf16.mxu0 0
        %443 = vmatpush1.bf16.msra.mxu0 %v382
        %444 = vmatprep.subr.bf16.mxu0 0
        %445 = vmatpush1.bf16.msra.mxu0 %v383
        %446 = vmatprep.subr.bf16.mxu0 0
        %447 = vmatpush1.bf16.msra.mxu0 %v384
        %448 = vmatprep.subr.bf16.mxu0 0
        %449 = vmatpush1.bf16.msra.mxu0 %v385
        %450 = vmatprep.subr.bf16.mxu0 0
        %451 = vmatpush1.bf16.msra.mxu0 %v386
        %452 = vmatprep.subr.bf16.mxu0 0
        %453 = vmatpush1.bf16.msra.mxu0 %v387
        %454 = vmatprep.subr.bf16.mxu0 0
        %455 = vmatpush1.bf16.msra.mxu0 %v388
        %456 = vmatprep.subr.bf16.mxu0 0
        %457 = vmatpush1.bf16.msra.mxu0 %v389
        %458 = vmatprep.subr.bf16.mxu0 0
        %459 = vmatpush1.bf16.msra.mxu0 %v390
        %460 = vmatprep.subr.bf16.mxu0 0
        %461 = vmatpush1.bf16.msra.mxu0 %v391
        %462 = vmatprep.subr.bf16.mxu0 0
        %463 = vmatpush1.bf16.msra.mxu0 %v392
        %464 = vmatprep.mubr.bf16.mxu0 %v373
        %465 = vmatmul.mubr.bf16.gmra.mrb[0].mxu0 %v372
        %v466 = vpop.f32.mrb[0].mxu0
        %v467 = vadd.f32 %v430, %v466
        %v468 = vpop.f32.mrb[0].mxu0
        %v469 = vpop.f32.mrb[0].mxu0
        %v470 = vpop.f32.mrb[0].mxu0
        %471 = vdwg.mxu0
        %472 = vmatprep.subr.bf16.mxu0 0
        %473 = vmatpush1.bf16.msra.mxu0 %v393
        %474 = vmatprep.subr.bf16.mxu0 0
        %475 = vmatpush1.bf16.msra.mxu0 %v394
        %476 = vmatprep.subr.bf16.mxu0 0
        %477 = vmatpush1.bf16.msra.mxu0 %v395
        %478 = vmatprep.subr.bf16.mxu0 0
        %479 = vmatpush1.bf16.msra.mxu0 %v396
        %480 = vmatprep.subr.bf16.mxu0 0
        %481 = vmatpush1.bf16.msra.mxu0 %v397
        %482 = vmatprep.subr.bf16.mxu0 0
        %483 = vmatpush1.bf16.msra.mxu0 %v398
        %484 = vmatprep.subr.bf16.mxu0 0
        %485 = vmatpush1.bf16.msra.mxu0 %v399
        %486 = vmatprep.subr.bf16.mxu0 0
        %487 = vmatpush1.bf16.msra.mxu0 %v400
        %488 = vmatprep.subr.bf16.mxu0 0
        %489 = vmatpush1.bf16.msra.mxu0 %v401
        %490 = vmatprep.subr.bf16.mxu0 0
        %491 = vmatpush1.bf16.msra.mxu0 %v402
        %492 = vmatprep.subr.bf16.mxu0 0
        %493 = vmatpush1.bf16.msra.mxu0 %v403
        %494 = vmatprep.subr.bf16.mxu0 0
        %495 = vmatpush1.bf16.msra.mxu0 %v404
        %496 = vmatprep.subr.bf16.mxu0 0
        %497 = vmatpush1.bf16.msra.mxu0 %v405
        %498 = vmatprep.subr.bf16.mxu0 0
        %499 = vmatpush1.bf16.msra.mxu0 %v406
        %500 = vmatprep.subr.bf16.mxu0 0
        %501 = vmatpush1.bf16.msra.mxu0 %v407
        %502 = vmatprep.subr.bf16.mxu0 0
        %503 = vmatpush1.bf16.msra.mxu0 %v408
        %504 = vmatprep.mubr.bf16.mxu0 %v375
        %505 = vmatmul.mubr.bf16.gmra.mrb[0].mxu0 %v374
        %v506 = vpop.f32.mrb[0].mxu0
        %v507 = vadd.f32 %v467, %v506
        %v508 = vpop.f32.mrb[0].mxu0
        %v509 = vpop.f32.mrb[0].mxu0
        %v510 = vpop.f32.mrb[0].mxu0
        %511 = vdwg.mxu0
        %512 = vmatprep.subr.bf16.mxu0 0
        %513 = vmatpush1.bf16.msra.mxu0 %v409
        %514 = vmatprep.subr.bf16.mxu0 0
        %515 = vmatpush1.bf16.msra.mxu0 %v410
        %516 = vmatprep.subr.bf16.mxu0 0
        %517 = vmatpush1.bf16.msra.mxu0 %v411
        %518 = vmatprep.subr.bf16.mxu0 0
        %519 = vmatpush1.bf16.msra.mxu0 %v412
        %520 = vmatprep.subr.bf16.mxu0 0
        %521 = vmatpush1.bf16.msra.mxu0 %v413
        %522 = vmatprep.subr.bf16.mxu0 0
        %523 = vmatpush1.bf16.msra.mxu0 %v414
        %524 = vmatprep.subr.bf16.mxu0 0
        %525 = vmatpush1.bf16.msra.mxu0 %v415
        %526 = vmatprep.subr.bf16.mxu0 0
        %527 = vmatpush1.bf16.msra.mxu0 %v416
        %528 = vmatprep.subr.bf16.mxu0 0
        %529 = vmatpush1.bf16.msra.mxu0 0
        %530 = vmatprep.subr.bf16.mxu0 0
        %531 = vmatpush1.bf16.msra.mxu0 0
        %532 = vmatprep.subr.bf16.mxu0 0
        %533 = vmatpush1.bf16.msra.mxu0 0
        %534 = vmatprep.subr.bf16.mxu0 0
        %535 = vmatpush1.bf16.msra.mxu0 0
        %536 = vmatprep.subr.bf16.mxu0 0
        %537 = vmatpush1.bf16.msra.mxu0 0
        %538 = vmatprep.subr.bf16.mxu0 0
        %539 = vmatpush1.bf16.msra.mxu0 0
        %540 = vmatprep.subr.bf16.mxu0 0
        %541 = vmatpush1.bf16.msra.mxu0 0
        %542 = vmatprep.subr.bf16.mxu0 0
        %543 = vmatpush1.bf16.msra.mxu0 0
        %544 = vmatprep.mubr.bf16.mxu0 0
        %545 = vmatmul.mubr.bf16.gmra.mrb[0].mxu0 %v376
        %v546 = vpop.f32.mrb[0].mxu0
        %v547 = vadd.f32 %v507, %v546
        %v548 = vpop.f32.mrb[0].mxu0
        %v549 = vpop.f32.mrb[0].mxu0
        %v550 = vpop.f32.mrb[0].mxu0
        %551 = vdwg.mxu0
        %v552 = vmul.f32 %v547, 0.2
        %v553 = vmax.f32 %v547, %v552
        %v554 = vpack.c.bf16 %v553, %v553
        %v555 = vld [vmem:[%s4] sm:$0x1]
        %v557 = vlaneseq
        %v558 = vshrl.u32 %v557, 7
        %v559 = vsub.s32 0, %v558
        %v560 = vrot.slane %v555, %v559
        %562 = vmatprep.subr.bf16.mxu0 0
        %563 = vmatpush1.bf16.msra.mxu0 %v417
        %564 = vmatprep.subr.bf16.mxu0 0
        %565 = vmatpush1.bf16.msra.mxu0 %v418
        %566 = vmatprep.subr.bf16.mxu0 0
        %567 = vmatpush1.bf16.msra.mxu0 %v419
        %568 = vmatprep.subr.bf16.mxu0 0
        %569 = vmatpush1.bf16.msra.mxu0 %v420
        %570 = vmatprep.subr.bf16.mxu0 0
        %571 = vmatpush1.bf16.msra.mxu0 %v421
        %572 = vmatprep.subr.bf16.mxu0 0
        %573 = vmatpush1.bf16.msra.mxu0 %v422
        %574 = vmatprep.subr.bf16.mxu0 0
        %575 = vmatpush1.bf16.msra.mxu0 %v423
        %576 = vmatprep.subr.bf16.mxu0 0
        %577 = vmatpush1.bf16.msra.mxu0 %v424
        %578 = vmatprep.subr.bf16.mxu0 0
        %579 = vmatpush1.bf16.msra.mxu0 0
        %580 = vmatprep.subr.bf16.mxu0 0
        %581 = vmatpush1.bf16.msra.mxu0 0
        %582 = vmatprep.subr.bf16.mxu0 0
        %583 = vmatpush1.bf16.msra.mxu0 0
        %584 = vmatprep.subr.bf16.mxu0 0
        %585 = vmatpush1.bf16.msra.mxu0 0
        %586 = vmatprep.subr.bf16.mxu0 0
        %587 = vmatpush1.bf16.msra.mxu0 0
        %588 = vmatprep.subr.bf16.mxu0 0
        %589 = vmatpush1.bf16.msra.mxu0 0
        %590 = vmatprep.subr.bf16.mxu0 0
        %591 = vmatpush1.bf16.msra.mxu0 0
        %592 = vmatprep.subr.bf16.mxu0 0
        %593 = vmatpush1.bf16.msra.mxu0 0
        %594 = vmatprep.mubr.bf16.mxu0 0
        %595 = vmatmul.mubr.bf16.gmra.mrb[0].mxu0 %v554
        %v596 = vpop.f32.mrb[0].mxu0
        %v597 = vadd.f32 %v560, %v596
        %v598 = vpop.f32.mrb[0].mxu0
        %v599 = vpop.f32.mrb[0].mxu0
        %v600 = vpop.f32.mrb[0].mxu0
        %601 = vdwg.mxu0
        %v602 = vtanh.pop %v597
        %603 = vst [vmem:[%s269] sm:$0xff] %v602
        %s604 = sand.u32 %s141, 1
        %s605 = scalar_lea.sflag [#allocation4], %s604
        %s606 = sand.u32 %s141, 1
        %s607 = smul.addr %s606, 8
        %s608 = scalar_lea.vmem [#allocation8], %s607
        // Predicated region
        $region53: #{tpu_custom_call.1} parent=39 // pred_check
          %p609 = pneg %p151
        $region54: #{tpu_custom_call.1} parent=39 // pred_check_branch
          %611 = sbr.rel (%p609) target = $region56
        $region55: #{tpu_custom_call.1} parent=39 // pred_region
          %s613 = ssub.s32 128, 128
          %614 = vsyncadd %s605, %s613
          %s615 = smul.addr %s23, 128
          %s616 = scalar_lea.hbm %s5, %s615
          %s618 = sshll.u32 %s608, 4
          %s619 = int_to_ptr.vmem [resolvable:$true] %s618
          %621 = dma.vmem_to_hbm [thread:$0]  %s619, 128, %s616, %s605
        $region56: #{tpu_custom_call.1} parent=39 // pred_fallthru
          _
      $region40: #{tpu_custom_call.1} parent=5 // pred_fallthru
        _
      %p622 = scmp.le.s32.totalorder 2, %s18
      // Predicated region
      $region57: #{tpu_custom_call.1} parent=5 // pred_check
        %p623 = pneg %p622
      $region58: #{tpu_custom_call.1} parent=5 // pred_check_branch
        %625 = sbr.rel (%p623) target = $region60
      $region59: #{tpu_custom_call.1} parent=5 // pred_region
        %s626 = ssub.s32 %s18, 2
        // Predicated region
        $region61: #{tpu_custom_call.1} parent=59 // pred_check
          %p627 = pneg %p157
        $region62: #{tpu_custom_call.1} parent=59 // pred_check_branch
          %629 = sbr.rel (%p627) target = $region64
        $region63: #{tpu_custom_call.1} parent=59 // pred_region
          %s630 = sand.u32 %s142, 1
          %s631 = scalar_lea.sflag [#allocation4], %s630
          %s632 = sand.u32 %s142, 1
          %s633 = smul.addr %s632, 8
          %s634 = scalar_lea.vmem [#allocation8], %s633
          %635 = dma.done %s631, 128
        $region64: #{tpu_custom_call.1} parent=59 // pred_fallthru
          _
      $region60: #{tpu_custom_call.1} parent=5 // pred_fallthru
        _
    $region6: #{tpu_custom_call.1} parent=1 // loop_footer
      %s22 = sadd.s32 1, %s18
    $region7: #{tpu_custom_call.1} parent=1 // loop_footer_branch
      %17 = sbr.rel target = $region3
    $region8: #{tpu_custom_call.1} parent=1 // loop_exit
      _
    %636 = vsyncpa [#allocation3], 1
    %s637 = scalar_lea.sflag [#allocation3], 1
    %638 = vsyncpa %s637, 1
    %639 = vsyncpa [#allocation6], 1
    %640 = vsyncpa [#allocation4], 1
    %s641 = scalar_lea.sflag [#allocation4], 1
    %642 = vsyncpa %s641, 1

</llo_original>
